<compile_context>
chip_gen: v5e
topology: v5e:2x2
jax: 0.10.0
libtpu: 0.0.40
codegen_flags: <defaults>
</compile_context>

<pallas_src>
import math

import jax
import jax.numpy as jnp
from jax.experimental import pallas as pl
from jax.experimental.pallas import tpu as pltpu


def build_pe_table(max_len: int, d_model: int) -> jnp.ndarray:
    """Deterministic positional-encoding buffer, identical to the torch __init__."""
    position = jnp.arange(max_len, dtype=jnp.float32)[:, None]            # [max_len, 1]
    div_term = jnp.exp(
        jnp.arange(0, d_model, 2, dtype=jnp.float32) * (-math.log(10000.0) / d_model)
    )                                                                     # [d_model/2]
    pe = jnp.zeros((max_len, d_model), dtype=jnp.float32)
    pe = pe.at[:, 0::2].set(jnp.sin(position * div_term))
    pe = pe.at[:, 1::2].set(jnp.cos(position * div_term))
    return pe                                                             # [max_len, d_model]


def _choose_tiles(B: int, C: int, itemsize: int, target_bytes: int = 2 * 1024 * 1024):
    """Pick ~1-4 MiB lane-dense blocks.

    TC: multiple of 128 dividing C (or the full C when C % 128 != 0).
    TB: multiple of 8 dividing B (or the full B when B % 8 != 0).
    """
    if C % 128 == 0:
        max_tc = max(128, (target_bytes // (8 * itemsize)) // 128 * 128)
        TC = min(C, max_tc)
        while C % TC != 0:
            TC -= 128
    else:
        # TODO(synk): seq_len*d_model not a multiple of 128 falls back to a full
        # (lane-masked) row block; fine for small rows, revisit for huge odd rows.
        TC = C
    if B % 8 == 0:
        TB = min(B, max(8, (target_bytes // (TC * itemsize)) // 8 * 8))
        while B % TB != 0:
            TB -= 8
    else:
        TB = B
    return TB, TC


def _make_pe_kernel(p: float, training: bool):
    """Kernel body: out = dropout(x + pe) on flattened (batch, seq*d_model) tiles."""
    use_dropout = training and p > 0.0
    threshold = int(p * (1 << 24))        # keep iff 24-bit uniform >= p
    scale = 1.0 / (1.0 - p) if p < 1.0 else 0.0

    def kernel(seed_ref, x_ref, pe_ref, o_ref):
        # x block: (TB, TC); pe block: (1, TC) -> broadcasts over the batch rows.
        y = x_ref[...] + pe_ref[...]

        if use_dropout:
            # Inverted dropout with the TPU hardware PRNG (integer threshold
            # compare; no float convert).  RNG stream differs from torch's but
            # the keep-probability / scaling semantics match nn.Dropout.
            pltpu.prng_seed(seed_ref[0], pl.program_id(0), pl.program_id(1))
            bits = pltpu.prng_random_bits(y.shape)
            bits24 = (bits & 0xFFFFFF).astype(jnp.int32)   # 24 low bits, sign-safe
            keep = bits24 >= jnp.int32(threshold)
            y = y * jnp.where(keep, scale, 0.0).astype(y.dtype)

        o_ref[...] = y.astype(o_ref.dtype)

    return kernel


def positional_encoding(x, pe_table, *, p: float = 0.1, training: bool = False, seed: int = 0):
    """x: [B, S, D]; pe_table: [max_len, D] (max_len >= S)."""
    B, S, D = x.shape
    C = S * D
    itemsize = jnp.dtype(x.dtype).itemsize

    # Flatten (S, D) -> one lane-dense row axis; cast pe once in the wrapper.
    x2 = x.reshape(B, C)
    pe2 = pe_table[:S].astype(x.dtype).reshape(1, C)

    TB, TC = _choose_tiles(B, C, itemsize)
    grid = (C // TC, B // TB)   # column tiles OUTER, batch tiles INNER (pe stays resident)

    kernel = _make_pe_kernel(p, training)
    seed_arr = jnp.array([seed], dtype=jnp.int32)

    out2 = pl.pallas_call(
        kernel,
        out_shape=jax.ShapeDtypeStruct((B, C), x.dtype),
        grid_spec=pltpu.PrefetchScalarGridSpec(
            num_scalar_prefetch=1,
            grid=grid,
            in_specs=[
                pl.BlockSpec((TB, TC), lambda ci, bi, seed: (bi, ci)),
                pl.BlockSpec((1, TC), lambda ci, bi, seed: (0, ci)),
            ],
            out_specs=pl.BlockSpec((TB, TC), lambda ci, bi, seed: (bi, ci)),
        ),
        compiler_params=pltpu.CompilerParams(
            dimension_semantics=("parallel", "parallel"),
            vmem_limit_bytes=32 * 1024 * 1024,
        ),
    )(seed_arr, x2, pe2)

    return out2.reshape(B, S, D)


if __name__ == "__main__":
    # Small shapes consistent with the module's forward: [batch, seq_len, d_model]
    B, S, D = 2, 8, 32
    MAX_LEN = 64  # table length (module default is 5000; any value >= S works)

    key = jax.random.PRNGKey(0)
    x = jax.random.normal(key, (B, S, D), dtype=jnp.float32)
    pe_table = build_pe_table(MAX_LEN, D)

    # Eval-mode forward (dropout is identity, like nn.Dropout.eval()).
    out = positional_encoding(x, pe_table, p=0.1, training=False)
    out = jax.block_until_ready(out)

    ref = x + pe_table[:S][None, :, :]
    assert out.shape == (B, S, D)
    assert jnp.allclose(out, ref, atol=1e-6, rtol=1e-6)

    # Training path uses the TPU hardware PRNG (prng_seed has no CPU/interpret
    # lowering), so only exercise it when actually running on a TPU backend.
    if jax.default_backend() == "tpu":
        p = 0.1
        out_train = positional_encoding(x, pe_table, p=p, training=True, seed=123)
        out_train = jax.block_until_ready(out_train)
        assert out_train.shape == (B, S, D)
        # Every element must be either dropped (exactly 0) or ref scaled by 1/(1-p).
        ok = jnp.all(
            (out_train == 0.0) | jnp.isclose(out_train, ref / (1.0 - p), atol=1e-5)
        )
        assert bool(ok)

    print("KERNEL_OK")
</pallas_src>

<mosaic_0001>
module attributes {stable_mosaic.version = 11 : i64} {
  func.func @kernel(%arg0: i32, %arg1: i32, %arg2: memref<1xi32, #tpu.memory_space<smem>>, %arg3: memref<2x256xf32, #tpu.memory_space<vmem>>, %arg4: memref<1x256xf32, #tpu.memory_space<vmem>>, %arg5: memref<2x256xf32, #tpu.memory_space<vmem>>) attributes {dimension_semantics = [#tpu.dimension_semantics<parallel>, #tpu.dimension_semantics<parallel>], iteration_bounds = array<i64: 1, 1>, scalar_prefetch = 1 : i64, scratch_operands = 0 : i64, tpu.core_type = #tpu.core_type<tc>, window_params = [{transform_indices = @transform_0, window_bounds = array<i64: 2, 256>}, {transform_indices = @transform_1, window_bounds = array<i64: 1, 256>}, {transform_indices = @transform_2, window_bounds = array<i64: 2, 256>}]} {
    %c0 = arith.constant 0 : index
    %c0_0 = arith.constant 0 : index
    %0 = vector.load %arg3[%c0, %c0_0] : memref<2x256xf32, #tpu.memory_space<vmem>>, vector<2x256xf32>
    %c0_1 = arith.constant 0 : index
    %c0_2 = arith.constant 0 : index
    %1 = vector.load %arg4[%c0_1, %c0_2] : memref<1x256xf32, #tpu.memory_space<vmem>>, vector<1x256xf32>
    %2 = vector.broadcast %1 : vector<1x256xf32> to vector<2x256xf32>
    %3 = arith.addf %0, %2 : vector<2x256xf32>
    %c0_3 = arith.constant 0 : index
    %c0_4 = arith.constant 0 : index
    %4 = vector.load %arg5[%c0_3, %c0_4] : memref<2x256xf32, #tpu.memory_space<vmem>>, vector<2x256xf32>
    tpu.vector_store %arg5[%c0_3, %c0_4], %3 {strides = array<i32>} : memref<2x256xf32, #tpu.memory_space<vmem>>, vector<2x256xf32>,
    return
  }
  func.func @transform_0(%arg0: i32, %arg1: i32, %arg2: memref<1xi32, #tpu.memory_space<smem>>) -> (i32, i32) {
    %c0_i32 = arith.constant 0 : i32
    return %arg1, %arg0 : i32, i32
  }
  func.func @transform_1(%arg0: i32, %arg1: i32, %arg2: memref<1xi32, #tpu.memory_space<smem>>) -> (i32, i32) {
    %c0_i32 = arith.constant 0 : i32
    %c0_i32_0 = arith.constant 0 : i32
    return %c0_i32, %arg0 : i32, i32
  }
  func.func @transform_2(%arg0: i32, %arg1: i32, %arg2: memref<1xi32, #tpu.memory_space<smem>>) -> (i32, i32) {
    %c0_i32 = arith.constant 0 : i32
    return %arg1, %arg0 : i32, i32
  }
}

</mosaic_0001>

<llo_original>
// kernel: tpu_custom_call.1
$region0: #{tpu_custom_call.1}
  #allocation0 [shape = 'u32[]', space=smem, size = 0x4, offset = 0x4, fixed_abs, tag = 'smem constant byte address 0x4 - core index']
  #allocation1 [shape = 'u32[72,128]{1,0:T(1,128)}', space=vmem, size = 0x9000, scoped, tag = 'internal scratch']
  #allocation2 [shape = 's32[1]{0}', space=sflag, size = 0x4, scoped, tag = 'scoped memory for tpu_custom_call.1']
  #allocation3 [shape = 's32[1]{0:T(128)S(6)}', space=smem, size = 0x200, scoped, tag = 'prefetched SMEM operand 0']
  %s0 = inlined_call_operand.<no memory space> [shape: s32[1], index: 0, kind: input, shape index: {}]
  %s1 = inlined_call_operand.hbm [shape: f32[2,256], index: 1, kind: input, shape index: {}]
  %s2 = inlined_call_operand.vmem [shape: f32[1,256], index: 2, kind: input, shape index: {}]
  %s3 = inlined_call_operand.hbm [shape: f32[2,256], index: 3, kind: output, shape index: {}]
  %s4 = sld [smem:[#allocation0]]
  $region22: #{tpu_custom_call.1} parent=0
    _
  %s6 = ssub.s32 1, %s4
  %s7 = scalar_select 0, %s6, %s4
  %8 = sst [smem:[#allocation3]] %s0
  $region1: #{tpu_custom_call.1} parent=0
    #allocation4 [shape = 'u8[2048]{0}', space=vmem, size = 0x800, scoped, tag = 'input window, operand 1, single buffered']
    #allocation5 [shape = 's32[1]{0}', space=sflag, size = 0x4, scoped, tag = 'scoped memory for tpu_custom_call.1']
    #allocation6 [shape = 's32[1]{0}', space=sflag, size = 0x4, scoped, tag = 'scoped memory for tpu_custom_call.1']
    #allocation7 [shape = 'u8[2048]{0}', space=vmem, size = 0x800, scoped, tag = 'output window, operand 0, single buffered']
    %9 = vsyncpa [#allocation5], 0
    %10 = vsyncpa [#allocation6], 0
    // Predicated region
    $region2: #{tpu_custom_call.1} parent=1 // pred_check
      _
    $region3: #{tpu_custom_call.1} parent=1 // pred_check_branch
      %12 = sbr.rel (0) target = $region5
    $region4: #{tpu_custom_call.1} parent=1 // pred_region
      %14 = vsyncadd [#allocation5], 0
      %s16 = sshll.u32 %s1, 4
      %s17 = int_to_ptr.hbm [resolvable:$true] %s16
      %s18 = sshll.u32 [#allocation4], 4
      %s19 = int_to_ptr.vmem [resolvable:$true] %s18
      %21 = dma.hbm_to_vmem [thread:$0]  %s17, 64, %s19, [#allocation5]
    $region5: #{tpu_custom_call.1} parent=1 // pred_fallthru
      _
    // Predicated region
    $region6: #{tpu_custom_call.1} parent=1 // pred_check
      _
    $region7: #{tpu_custom_call.1} parent=1 // pred_check_branch
      %23 = sbr.rel (0) target = $region9
    $region8: #{tpu_custom_call.1} parent=1 // pred_region
      _
    $region9: #{tpu_custom_call.1} parent=1 // pred_fallthru
      _
    // Predicated region
    $region10: #{tpu_custom_call.1} parent=1 // pred_check
      _
    $region11: #{tpu_custom_call.1} parent=1 // pred_check_branch
      %25 = sbr.rel (0) target = $region13
    $region12: #{tpu_custom_call.1} parent=1 // pred_region
      %27 = dma.done [#allocation5], 64
    $region13: #{tpu_custom_call.1} parent=1 // pred_fallthru
      _
    %v28 = vld [vmem:[#allocation4] sm:$0xf]
    %v29 = vld [vmem:[%s2] sm:$0x3]
    %v31 = vperm.slane %v29, 0
    %v32 = vperm.slane %v29, 1
    %v33 = vrot.slane %v32, 6
    %vm34 = vcmask 1041408
    %v35 = vsel %vm34, %v31, %v33
    %v37 = vadd.f32 %v28, %v35
    %38 = vst [vmem:[#allocation7] sm:$0xf] %v37
    // Predicated region
    $region14: #{tpu_custom_call.1} parent=1 // pred_check
      _
    $region15: #{tpu_custom_call.1} parent=1 // pred_check_branch
      %40 = sbr.rel (0) target = $region17
    $region16: #{tpu_custom_call.1} parent=1 // pred_region
      %42 = vsyncadd [#allocation6], 0
      %s44 = sshll.u32 [#allocation7], 4
      %s45 = int_to_ptr.vmem [resolvable:$true] %s44
      %s46 = sshll.u32 %s3, 4
      %s47 = int_to_ptr.hbm [resolvable:$true] %s46
      %49 = dma.vmem_to_hbm [thread:$0]  %s45, 64, %s47, [#allocation6]
    $region17: #{tpu_custom_call.1} parent=1 // pred_fallthru
      _
    // Predicated region
    $region18: #{tpu_custom_call.1} parent=1 // pred_check
      _
    $region19: #{tpu_custom_call.1} parent=1 // pred_check_branch
      %51 = sbr.rel (0) target = $region21
    $region20: #{tpu_custom_call.1} parent=1 // pred_region
      %53 = dma.done [#allocation6], 64
    $region21: #{tpu_custom_call.1} parent=1 // pred_fallthru
      _
    %54 = vsyncpa [#allocation5], 1
    %55 = vsyncpa [#allocation6], 1

</llo_original>
